<compile_context>
chip_gen: v6e
topology: v6e:2x2x1
jax: 0.10.0
libtpu: 0.0.40
codegen_flags: <defaults>
</compile_context>

<pallas_src>
import functools

import jax
import jax.numpy as jnp
import numpy as np
from jax import lax
from jax.experimental import pallas as pl
from jax.experimental.pallas import tpu as pltpu


_ACC_TILE_BYTES = 128 * 1024   # cap on the f32 (CO_pad, TW) output/accumulator tile
_MAX_TW = 2048                 # cap on the output-width tile (lanes)


def _round_up(x, m):
    return (x + m - 1) // m * m


def _vmem_buf_bytes(shape, dtype):
    """Padded VMEM footprint of one buffer (last dim -> 128 lanes, 2nd-minor -> native sublanes)."""
    itemsize = jnp.dtype(dtype).itemsize
    sub = 8 * max(1, 4 // itemsize)          # 8 for f32, 16 for bf16, 32 for int8
    s = [int(d) for d in shape]
    if len(s) >= 1:
        s[-1] = _round_up(s[-1], 128)
    if len(s) >= 2:
        s[-2] = _round_up(s[-2], sub)
    n = 1
    for d in s:
        n *= d
    return n * itemsize


def _vmem_cap_bytes():
    """~7/8 of physical VMEM: ~112 MiB on 128 MiB parts (v5e/v6e), ~56 MiB on v7x."""
    try:
        phys = int(pltpu.get_tpu_info().vmem_capacity_bytes)
    except Exception:
        phys = 64 * 2 ** 20                  # conservative default
    return (phys * 7) // 8


def _im2col_matmul_kernel(x2_ref, w_ref, b_ref, o_ref):
    # x2_ref: (K*CI, TW)   im2col input tile (output width on lanes)
    # w_ref:  (CO_pad, K*CI) depthwise-folded pointwise weights (input dtype)
    # b_ref:  (CO_pad, 1)  fused bias (f32)
    # o_ref:  (CO_pad, TW) NCW-native output tile (lane-dense)
    acc = jnp.dot(w_ref[...], x2_ref[...], preferred_element_type=jnp.float32)
    o_ref[...] = (acc + b_ref[...]).astype(o_ref.dtype)


def _make_tap_kernel(K, TW, dilation):
    def kernel(x_ref, w_ref, b_ref, o_ref):
        # x_ref: (CI, W_in_total) padded input row, resident per batch element
        # w_ref: (K, CO_pad, CI)  per-tap folded weights (input dtype)
        # b_ref: (CO_pad, 1) f32 ; o_ref: (CO_pad, TW)
        start = pl.multiple_of(pl.program_id(1) * TW, 128)     # TW is a multiple of 128
        acc = jnp.zeros(o_ref.shape, jnp.float32)
        for k in range(K):                                     # K static & small
            xk = x_ref[:, pl.ds(start + k * dilation, TW)]     # (CI, TW) contiguous lane window
            acc = acc + jnp.dot(w_ref[k], xk, preferred_element_type=jnp.float32)
        o_ref[...] = (acc + b_ref[...]).astype(o_ref.dtype)
    return kernel


@functools.partial(jax.jit, static_argnames=("kernel_size", "stride", "dilation"))
def depthwise_conv1d(x, dw_weight, dw_bias, pw_weight, pw_bias,
                     *, kernel_size, stride=1, dilation=1):
    """Matches PyTorch DepthwiseConv1d.forward.

    x:         [B, CI, W]   (NCW)
    dw_weight: [CI, 1, K]   depthwise (groups=CI) conv weight
    dw_bias:   [CI]
    pw_weight: [CO, CI, 1]  pointwise 1x1 conv weight
    pw_bias:   [CO]
    returns:   [B, CO, WO]
    """
    B, CI, W = x.shape
    CO = pw_weight.shape[0]
    K, S, D = kernel_size, stride, dilation

    # "same" padding / output width exactly as Conv1dSamePadding.forward computes them.
    pad = (S * (W - 1) - W + K + (D - 1) * (K - 1)) // 2
    WO = (W + 2 * pad - D * (K - 1) - 1) // S + 1

    cap = _vmem_cap_bytes()
    out_dtype = x.dtype

    # ---- parameter folding: depthwise taps folded through the 1x1 conv (exact, done in f32,
    # ---- then cast ONCE to the compute dtype so the MXU sees native-dtype operands).
    dw = dw_weight[:, 0, :].astype(jnp.float32)                 # [CI, K]
    pw = pw_weight[:, :, 0].astype(jnp.float32)                 # [CO, CI]
    bias = dw_bias.astype(jnp.float32) @ pw.T + pw_bias.astype(jnp.float32)   # [CO]

    CO_pad = _round_up(CO, 8)                                   # sublane axis of output tiles
    bias = jnp.pad(bias, (0, CO_pad - CO)).reshape(CO_pad, 1)   # stays f32

    # Output-width tile: multiple of 128 lanes, f32 (CO_pad, TW) tile capped at ~128 KiB.
    tw_acc = max(128, (_ACC_TILE_BYTES // 4 // CO_pad) // 128 * 128)
    TW = min(_MAX_TW, _round_up(WO, 128), tw_acc)

    use_im2col = (S != 1) or (CI < 128)

    if not use_im2col:
        WO_pad = _round_up(WO, TW)
        NWT = WO_pad // TW
        W_in_total = _round_up(WO_pad + D * (K - 1), 128)
        fp_b = (2 * _vmem_buf_bytes((CI, W_in_total), x.dtype)      # resident row, 2 buffers
                + 2 * _vmem_buf_bytes((K, CO_pad, CI), x.dtype)
                + 2 * _vmem_buf_bytes((CO_pad, 1), jnp.float32)
                + 2 * _vmem_buf_bytes((CO_pad, TW), out_dtype)
                + _vmem_buf_bytes((CO_pad, TW), jnp.float32))
        if fp_b > cap:
            use_im2col = True       # resident row does not fit -> VMEM-safe im2col fallback

    if not use_im2col:
        # ---------------- Path B: resident [CI, W] row, K dots of contraction depth CI --------
        w3 = dw.T[:, None, :] * pw[None, :, :]                  # [K, CO, CI] = dw[ci,k]*pw[co,ci]
        w3 = jnp.pad(w3, ((0, 0), (0, CO_pad - CO), (0, 0))).astype(out_dtype)
        x_in = jnp.pad(x, ((0, 0), (0, 0), (pad, W_in_total - W - pad)))

        out = pl.pallas_call(
            _make_tap_kernel(K, TW, D),
            out_shape=jax.ShapeDtypeStruct((B, CO_pad, WO_pad), out_dtype),
            grid_spec=pltpu.PrefetchScalarGridSpec(
                num_scalar_prefetch=0,
                grid=(B, NWT),
                in_specs=[
                    # Constant block index across the W-tile axis: the padded row is DMA'd once
                    # per batch element.  wt axis is "arbitrary" so megacore does not duplicate
                    # the row fetch across TensorCores.
                    pl.BlockSpec((None, CI, W_in_total), lambda b, wt: (b, 0, 0)),
                    pl.BlockSpec((K, CO_pad, CI), lambda b, wt: (0, 0, 0)),
                    pl.BlockSpec((CO_pad, 1), lambda b, wt: (0, 0)),
                ],
                out_specs=pl.BlockSpec((None, CO_pad, TW), lambda b, wt: (b, 0, wt)),
            ),
            compiler_params=pltpu.CompilerParams(
                dimension_semantics=("parallel", "arbitrary"),
                vmem_limit_bytes=int(min(cap, max(32 << 20, fp_b + fp_b // 2 + (4 << 20))))),
        )(x_in, w3, bias)
    else:
        # ---------------- Path A: wrapper im2col + single K*CI-contraction matmul --------------
        KCI = K * CI
        while True:
            fp_a = (2 * _vmem_buf_bytes((KCI, TW), x.dtype)
                    + 2 * _vmem_buf_bytes((CO_pad, KCI), x.dtype)
                    + 2 * _vmem_buf_bytes((CO_pad, 1), jnp.float32)
                    + 2 * _vmem_buf_bytes((CO_pad, TW), out_dtype)
                    + _vmem_buf_bytes((CO_pad, TW), jnp.float32))
            if fp_a <= cap or TW <= 128:
                break
            TW = max(128, (TW // 2) // 128 * 128)               # re-tile instead of silent clamp
        WO_pad = _round_up(WO, TW)
        NWT = WO_pad // TW

        # Fold the K taps into the contraction: W2[co, k*CI + ci] = dw[ci, k] * pw[co, ci].
        w2 = (dw.T[:, :, None] * pw.T[None, :, :]).reshape(KCI, CO).T     # [CO, K*CI]
        w2 = jnp.pad(w2, ((0, CO_pad - CO), (0, 0))).astype(out_dtype)

        # im2col (handles stride/dilation in the wrapper; no strided/shifted loads in-kernel).
        x_pad = jnp.pad(x, ((0, 0), (0, 0), (pad, pad)))
        taps = [x_pad[:, :, k * D: k * D + S * (WO - 1) + 1: S] for k in range(K)]
        x2 = jnp.concatenate(taps, axis=1)                                # [B, K*CI, WO]
        x2 = jnp.pad(x2, ((0, 0), (0, 0), (0, WO_pad - WO)))

        out = pl.pallas_call(
            _im2col_matmul_kernel,
            out_shape=jax.ShapeDtypeStruct((B, CO_pad, WO_pad), out_dtype),
            grid_spec=pltpu.PrefetchScalarGridSpec(
                num_scalar_prefetch=0,
                grid=(B, NWT),
                in_specs=[
                    pl.BlockSpec((None, KCI, TW), lambda b, wt: (b, 0, wt)),
                    pl.BlockSpec((CO_pad, KCI), lambda b, wt: (0, 0)),
                    pl.BlockSpec((CO_pad, 1), lambda b, wt: (0, 0)),
                ],
                out_specs=pl.BlockSpec((None, CO_pad, TW), lambda b, wt: (b, 0, wt)),
            ),
            compiler_params=pltpu.CompilerParams(
                dimension_semantics=("parallel", "parallel"),
                vmem_limit_bytes=int(min(cap, max(32 << 20, fp_a + fp_a // 2 + (4 << 20))))),
        )(x2, w2, bias)

    if CO_pad == CO and WO_pad == WO:
        return out
    return out[:, :CO, :WO]          # drop channel / lane padding (no transpose needed)


def _reference(x, dw_weight, dw_bias, pw_weight, pw_bias, K, S, D):
    """Plain-JAX reference mirroring the PyTorch forward (high-precision for the check)."""
    B, CI, W = x.shape
    pad = (S * (W - 1) - W + K + (D - 1) * (K - 1)) // 2
    xp = jnp.pad(x, ((0, 0), (0, 0), (pad, pad)))
    WO = (W + 2 * pad - D * (K - 1) - 1) // S + 1
    dw = dw_weight[:, 0, :]                   # [CI, K]
    h = jnp.zeros((B, CI, WO), jnp.float32)
    for k in range(K):
        sl = xp[:, :, k * D: k * D + S * (WO - 1) + 1: S]
        h = h + dw[:, k][None, :, None] * sl
    h = h + dw_bias[None, :, None]
    pw = pw_weight[:, :, 0]                   # [CO, CI]
    y = jnp.einsum("oc,bcw->bow", pw, h,
                   precision=lax.Precision.HIGHEST) + pw_bias[None, :, None]
    return y


if __name__ == "__main__":
    def _run_case(key, B, CI, CO, W, K, S, D):
        kx, k1, k2, k3, k4 = jax.random.split(key, 5)
        x = jax.random.normal(kx, (B, CI, W), jnp.float32)
        dw_weight = jax.random.normal(k1, (CI, 1, K), jnp.float32) * 0.3
        dw_bias = jax.random.normal(k2, (CI,), jnp.float32) * 0.1
        pw_weight = jax.random.normal(k3, (CO, CI, 1), jnp.float32) * 0.3
        pw_bias = jax.random.normal(k4, (CO,), jnp.float32) * 0.1
        out = depthwise_conv1d(x, dw_weight, dw_bias, pw_weight, pw_bias,
                               kernel_size=K, stride=S, dilation=D)
        out = jax.block_until_ready(out)
        ref = _reference(x, dw_weight, dw_bias, pw_weight, pw_bias, K, S, D)
        assert out.shape == ref.shape, (out.shape, ref.shape)
        np.testing.assert_allclose(np.asarray(out), np.asarray(ref), rtol=1e-4, atol=1e-4)

    root = jax.random.PRNGKey(0)
    keys = jax.random.split(root, 4)
    # small config matching the module defaults (im2col single-matmul path)
    _run_case(keys[0], B=2, CI=4, CO=8, W=16, K=3, S=1, D=1)
    # multiple W tiles + dilation (im2col path)
    _run_case(keys[1], B=2, CI=16, CO=64, W=700, K=5, S=1, D=2)
    # strided "same" conv (stride handled in the wrapper gather, no strided in-kernel loads)
    _run_case(keys[2], B=1, CI=8, CO=16, W=64, K=3, S=2, D=1)
    # wide-channel config (resident-row per-tap MXU path, contraction depth = CI)
    _run_case(keys[3], B=1, CI=128, CO=128, W=384, K=3, S=1, D=1)

    print("KERNEL_OK")
</pallas_src>

<mosaic_0001>
module attributes {stable_mosaic.version = 11 : i64} {
  func.func @_im2col_matmul_kernel(%arg0: i32, %arg1: i32, %arg2: memref<1x12x128xf32, #tpu.memory_space<vmem>>, %arg3: memref<8x12xf32, #tpu.memory_space<vmem>>, %arg4: memref<8x1xf32, #tpu.memory_space<vmem>>, %arg5: memref<1x8x128xf32, #tpu.memory_space<vmem>>) attributes {dimension_semantics = [#tpu.dimension_semantics<parallel>, #tpu.dimension_semantics<parallel>], iteration_bounds = array<i64: 2, 1>, scalar_prefetch = 0 : i64, scratch_operands = 0 : i64, tpu.core_type = #tpu.core_type<tc>, window_params = [{transform_indices = @transform_0, window_bounds = array<i64: 1, 12, 128>}, {pipeline_mode = #tpu.pipeline_mode<synchronous>, transform_indices = @transform_1, window_bounds = array<i64: 8, 12>}, {pipeline_mode = #tpu.pipeline_mode<synchronous>, transform_indices = @transform_2, window_bounds = array<i64: 8, 1>}, {transform_indices = @transform_3, window_bounds = array<i64: 1, 8, 128>}]} {
    %c0 = arith.constant 0 : index
    %c0_0 = arith.constant 0 : index
    %0 = vector.load %arg3[%c0, %c0_0] : memref<8x12xf32, #tpu.memory_space<vmem>>, vector<8x12xf32>
    %c0_1 = arith.constant 0 : index
    %c0_2 = arith.constant 0 : index
    %c0_3 = arith.constant 0 : index
    %1 = vector.load %arg2[%c0_1, %c0_2, %c0_3] : memref<1x12x128xf32, #tpu.memory_space<vmem>>, vector<1x12x128xf32>
    %2 = vector.shape_cast %1 : vector<1x12x128xf32> to vector<12x128xf32>
    %cst = arith.constant dense<0.000000e+00> : vector<8x128xf32>
    %3 = tpu.matmul %0, %2, %cst {dimension_numbers = #tpu.dot_dimension_numbers<[1], [0], [0], [1], [0, 0, 1, 1], [], []>} : vector<8x12xf32>, vector<12x128xf32>, vector<8x128xf32> -> vector<8x128xf32>
    %c0_4 = arith.constant 0 : index
    %c0_5 = arith.constant 0 : index
    %4 = vector.load %arg4[%c0_4, %c0_5] : memref<8x1xf32, #tpu.memory_space<vmem>>, vector<8x1xf32>
    %5 = vector.broadcast %4 : vector<8x1xf32> to vector<8x128xf32>
    %6 = arith.addf %3, %5 : vector<8x128xf32>
    %c0_6 = arith.constant 0 : index
    %c0_7 = arith.constant 0 : index
    %c0_8 = arith.constant 0 : index
    %7 = vector.load %arg5[%c0_6, %c0_7, %c0_8] : memref<1x8x128xf32, #tpu.memory_space<vmem>>, vector<1x8x128xf32>
    %8 = vector.shape_cast %7 : vector<1x8x128xf32> to vector<8x128xf32>
    %9 = vector.shape_cast %6 : vector<8x128xf32> to vector<1x8x128xf32>
    tpu.vector_store %arg5[%c0_6, %c0_7, %c0_8], %9 {strides = array<i32>} : memref<1x8x128xf32, #tpu.memory_space<vmem>>, vector<1x8x128xf32>,
    return
  }
  func.func @transform_0(%arg0: i32, %arg1: i32) -> (i32, i32, i32) {
    %c0_i32 = arith.constant 0 : i32
    %c0_i32_0 = arith.constant 0 : i32
    return %arg0, %c0_i32, %arg1 : i32, i32, i32
  }
  func.func @transform_1(%arg0: i32, %arg1: i32) -> (i32, i32) {
    %c0_i32 = arith.constant 0 : i32
    %c0_i32_0 = arith.constant 0 : i32
    %c0_i32_1 = arith.constant 0 : i32
    return %c0_i32, %c0_i32_0 : i32, i32
  }
  func.func @transform_2(%arg0: i32, %arg1: i32) -> (i32, i32) {
    %c0_i32 = arith.constant 0 : i32
    %c0_i32_0 = arith.constant 0 : i32
    %c0_i32_1 = arith.constant 0 : i32
    return %c0_i32, %c0_i32_0 : i32, i32
  }
  func.func @transform_3(%arg0: i32, %arg1: i32) -> (i32, i32, i32) {
    %c0_i32 = arith.constant 0 : i32
    %c0_i32_0 = arith.constant 0 : i32
    return %arg0, %c0_i32, %arg1 : i32, i32, i32
  }
}

</mosaic_0001>

<llo_original>
// kernel: depthwise_conv1d.1
$region0: #{depthwise_conv1d.1}
  #allocation0 [shape = 'u32[]', space=smem, size = 0x4, offset = 0x4, fixed_abs, tag = 'smem constant byte address 0x4 - core index']
  #allocation1 [shape = 'u32[144,128]{1,0:T(1,128)}', space=vmem, size = 0x12000, scoped, tag = 'internal scratch']
  %s0 = inlined_call_operand.vmem [shape: f32[2,12,128], index: 0, kind: input, shape index: {}]
  %s1 = inlined_call_operand.vmem [shape: f32[8,12], index: 1, kind: input, shape index: {}]
  %s2 = inlined_call_operand.vmem [shape: f32[8,1], index: 2, kind: input, shape index: {}]
  %s3 = inlined_call_operand.hbm [shape: f32[2,8,128], index: 3, kind: output, shape index: {}]
  %s4 = sld [smem:[#allocation0]]
  $region45: #{depthwise_conv1d.1} parent=0
    _
  %s6 = ssub.s32 1, %s4
  %s7 = scalar_select 0, %s6, %s4
  $region1: #{depthwise_conv1d.1} parent=0
    #allocation2 [shape = 'u8[8192]{0}', space=vmem, size = 0x2000, scoped, tag = 'output window, operand 0']
    #allocation3 [shape = 's32[2]{0}', space=sflag, size = 0x8, scoped, tag = 'scoped memory for depthwise_conv1d.1']
    %8 = vsyncpa [#allocation3], 0
    %s9 = scalar_lea.sflag [#allocation3], 1
    %10 = vsyncpa %s9, 0
    loop: start=0, step=1, limit=4
    $region2: #{depthwise_conv1d.1} parent=1 // loop_pre_header
      _
    $region3: #{depthwise_conv1d.1} parent=1 // loop_header
      %s12 = sphi 0, %s16
      %p13 = scmp.ge.s32.totalorder %s12, 4
      %s19 = sphi 0, %s31
      %s20 = sphi 0, %s27
      %s21 = sphi 0, %s19
      %s22 = sphi 0, %s20
      %s23 = sphi 0, %s21
      %s24 = sphi 0, %s22
      %s36 = sphi 0, %s38
      %s39 = sphi 0, %s36
      %s40 = sphi 0, %s39
      %s56 = sphi 0, %s40
      %s60 = sphi 0, %s60
      %s62 = sphi 0, %s60
      %s63 = sphi 0, %s62
      %s77 = sphi 0, %s63
      %s81 = sphi 0, %s81
      %s83 = sphi 0, %s81
      %s84 = sphi 0, %s83
      %s98 = sphi 0, %s84
      %s106 = sphi 0, %s108
      %s109 = sphi 0, %s106
      %s110 = sphi 0, %s109
      %s126 = sphi 0, %s110
    $region4: #{depthwise_conv1d.1} parent=1 // loop_header_branch
      %15 = sbr.rel (%p13) target = $region8
    $region5: #{depthwise_conv1d.1} parent=1 // loop_body
      %s17 = ssub.s32 %s12, 1
      %s18 = ssub.s32 %s12, 2
      %s25 = sadd.s32 1, %s20
      %p26 = scmp.ge.s32.totalorder %s25, 1
      %s27 = scalar_select %p26, 0, %s25
      %s28 = sadd.s32 1, %s19
      %s29 = scalar_select %p26, %s28, %s19
      %p30 = scmp.ge.s32.totalorder %s29, 2
      %s31 = scalar_select %p30, 0, %s29
      %s32 = ssub.s32 %s19, %s31
      %s33 = ssub.s32 %s20, %s27
      %s34 = sor.u32 %s32, %s33
      %p35 = scmp.eq.s32.totalorder %s34, 0
      %s37 = sadd.s32 %s36, 1
      %s38 = scalar_select %p35, %s36, %s37
      %p41 = pneg %p35
      %p42 = scmp.eq.s32.totalorder %s12, 1
      %p43 = por %p41, %p42
      %p44 = scmp.ne.s32.totalorder %s36, %s39
      %p45 = scmp.eq.s32.totalorder %s12, 0
      %p46 = por %p44, %p45
      %p47 = scmp.ne.s32.totalorder %s36, %s39
      %p48 = scmp.eq.s32.totalorder %s17, 1
      %p49 = por %p47, %p48
      %p50 = scmp.ne.s32.totalorder %s39, %s40
      %p51 = scmp.eq.s32.totalorder %s17, 0
      %p52 = por %p50, %p51
      %p53 = scmp.ne.s32.totalorder %s39, %s40
      %p54 = scmp.eq.s32.totalorder %s18, 1
      %p55 = por %p53, %p54
      %p57 = scmp.ne.s32.totalorder %s40, %s56
      %p58 = scmp.eq.s32.totalorder %s18, 0
      %p59 = por %p57, %p58
      %s61 = sadd.s32 %s60, 1
      %p64 = scmp.eq.s32.totalorder %s12, 1
      %p65 = scmp.ne.s32.totalorder %s60, %s62
      %p66 = scmp.eq.s32.totalorder %s12, 0
      %p67 = por %p65, %p66
      %p68 = scmp.ne.s32.totalorder %s60, %s62
      %p69 = scmp.eq.s32.totalorder %s17, 1
      %p70 = por %p68, %p69
      %p71 = scmp.ne.s32.totalorder %s62, %s63
      %p72 = scmp.eq.s32.totalorder %s17, 0
      %p73 = por %p71, %p72
      %p74 = scmp.ne.s32.totalorder %s62, %s63
      %p75 = scmp.eq.s32.totalorder %s18, 1
      %p76 = por %p74, %p75
      %p78 = scmp.ne.s32.totalorder %s63, %s77
      %p79 = scmp.eq.s32.totalorder %s18, 0
      %p80 = por %p78, %p79
      %s82 = sadd.s32 %s81, 1
      %p85 = scmp.eq.s32.totalorder %s12, 1
      %p86 = scmp.ne.s32.totalorder %s81, %s83
      %p87 = scmp.eq.s32.totalorder %s12, 0
      %p88 = por %p86, %p87
      %p89 = scmp.ne.s32.totalorder %s81, %s83
      %p90 = scmp.eq.s32.totalorder %s17, 1
      %p91 = por %p89, %p90
      %p92 = scmp.ne.s32.totalorder %s83, %s84
      %p93 = scmp.eq.s32.totalorder %s17, 0
      %p94 = por %p92, %p93
      %p95 = scmp.ne.s32.totalorder %s83, %s84
      %p96 = scmp.eq.s32.totalorder %s18, 1
      %p97 = por %p95, %p96
      %p99 = scmp.ne.s32.totalorder %s84, %s98
      %p100 = scmp.eq.s32.totalorder %s18, 0
      %p101 = por %p99, %p100
      %s102 = ssub.s32 %s19, %s31
      %s103 = ssub.s32 %s20, %s27
      %s104 = sor.u32 %s102, %s103
      %p105 = scmp.eq.s32.totalorder %s104, 0
      %s107 = sadd.s32 %s106, 1
      %s108 = scalar_select %p105, %s106, %s107
      %p111 = pneg %p105
      %p112 = scmp.eq.s32.totalorder %s12, 1
      %p113 = por %p111, %p112
      %p114 = scmp.ne.s32.totalorder %s106, %s109
      %p115 = scmp.eq.s32.totalorder %s12, 0
      %p116 = por %p114, %p115
      %p117 = scmp.ne.s32.totalorder %s106, %s109
      %p118 = scmp.eq.s32.totalorder %s17, 1
      %p119 = por %p117, %p118
      %p120 = scmp.ne.s32.totalorder %s109, %s110
      %p121 = scmp.eq.s32.totalorder %s17, 0
      %p122 = por %p120, %p121
      %p123 = scmp.ne.s32.totalorder %s109, %s110
      %p124 = scmp.eq.s32.totalorder %s18, 1
      %p125 = por %p123, %p124
      %p127 = scmp.ne.s32.totalorder %s110, %s126
      %p128 = scmp.eq.s32.totalorder %s18, 0
      %p129 = por %p127, %p128
      %p130 = scmp.le.s32.totalorder 1, %s12
      %p131 = scmp.lt.s32.totalorder %s12, 3
      %p132 = pnand %p130, %p131
      %p133 = pneg %p132
      // Predicated region
      $region9: #{depthwise_conv1d.1} parent=5 // pred_check
        _
      $region10: #{depthwise_conv1d.1} parent=5 // pred_check_branch
        %135 = sbr.rel (%p132) target = $region12
      $region11: #{depthwise_conv1d.1} parent=5 // pred_region
        %s136 = ssub.s32 %s12, 1
        // Predicated region
        $region13: #{depthwise_conv1d.1} parent=11 // pred_check
          %p137 = pneg %p73
        $region14: #{depthwise_conv1d.1} parent=11 // pred_check_branch
          %139 = sbr.rel (%p137) target = $region16
        $region15: #{depthwise_conv1d.1} parent=11 // pred_region
          _
        $region16: #{depthwise_conv1d.1} parent=11 // pred_fallthru
          _
        // Predicated region
        $region17: #{depthwise_conv1d.1} parent=11 // pred_check
          %p140 = pneg %p94
        $region18: #{depthwise_conv1d.1} parent=11 // pred_check_branch
          %142 = sbr.rel (%p140) target = $region20
        $region19: #{depthwise_conv1d.1} parent=11 // pred_region
          _
        $region20: #{depthwise_conv1d.1} parent=11 // pred_fallthru
          _
      $region12: #{depthwise_conv1d.1} parent=5 // pred_fallthru
        _
      %p143 = scmp.lt.s32.totalorder %s12, 2
      // Predicated region
      $region21: #{depthwise_conv1d.1} parent=5 // pred_check
        %p144 = pneg %p143
      $region22: #{depthwise_conv1d.1} parent=5 // pred_check_branch
        %146 = sbr.rel (%p144) target = $region24
      $region23: #{depthwise_conv1d.1} parent=5 // pred_region
        // Predicated region
        $region25: #{depthwise_conv1d.1} parent=23 // pred_check
          %p147 = pneg %p46
        $region26: #{depthwise_conv1d.1} parent=23 // pred_check_branch
          %149 = sbr.rel (%p147) target = $region28
        $region27: #{depthwise_conv1d.1} parent=23 // pred_region
          %p150 = scmp.lt.s32.totalorder %s19, 1
          %s151 = scalar_select %p150, %s19, 1
          %p152 = scmp.lt.s32.totalorder %s20, 0
          %s153 = scalar_select %p152, %s20, 0
          %s154 = smul.addr %s151, 2
          %s155 = sadd.s32 %s153, %s154
          %s156 = smul.addr %s155, 8
          %s157 = scalar_lea.vmem %s0, %s156
        $region28: #{depthwise_conv1d.1} parent=23 // pred_fallthru
          _
      $region24: #{depthwise_conv1d.1} parent=5 // pred_fallthru
        _
      %p158 = scmp.le.s32.totalorder 1, %s12
      %p159 = scmp.lt.s32.totalorder %s12, 3
      %p160 = pnand %p158, %p159
      %p161 = pneg %p160
      // Predicated region
      $region29: #{depthwise_conv1d.1} parent=5 // pred_check
        _
      $region30: #{depthwise_conv1d.1} parent=5 // pred_check_branch
        %163 = sbr.rel (%p160) target = $region32
      $region31: #{depthwise_conv1d.1} parent=5 // pred_region
        %s164 = ssub.s32 %s12, 1
        %p165 = scmp.lt.s32.totalorder %s21, 1
        %s166 = scalar_select %p165, %s21, 1
        %p167 = scmp.lt.s32.totalorder %s22, 0
        %s168 = scalar_select %p167, %s22, 0
        %s169 = smul.addr %s166, 2
        %s170 = sadd.s32 %s168, %s169
        %s171 = smul.addr %s170, 8
        %s172 = scalar_lea.vmem %s0, %s171
        %p173 = pneg %p52
        %p174 = pneg %p49
        %p175 = pneg %p73
        %p176 = pneg %p70
        %p177 = pneg %p94
        %p178 = pneg %p91
        %p179 = pneg %p122
        %p180 = pneg %p119
        %s181 = sand.u32 %s109, 1
        %s182 = scalar_lea.sflag [#allocation3], %s181
        %s183 = sand.u32 %s109, 1
        %s184 = smul.addr %s183, 8
        %s185 = scalar_lea.vmem [#allocation2], %s184
        %p186 = scmp.lt.s32.totalorder %s21, 1
        %s187 = scalar_select %p186, %s21, 1
        %p188 = scmp.lt.s32.totalorder %s22, 0
        %s189 = scalar_select %p188, %s22, 0
        %s190 = smul.addr %s187, 2
        %s191 = sadd.s32 %s189, %s190
        %s192 = smul.addr %s191, 8
        %s193 = scalar_lea.vmem %s0, %s192
        %v194 = vld [vmem:[%s1] sm:$0xff]
        %v195 = vld [vmem:[%s193] sm:$0xff]
        %v196 = vld [vmem:[%s193 + $0x8] sm:$0xf]
        %v197 = vld [vmem:[%s2] sm:$0xff]
        %199 = vset.pattern.permute.xlu0 0
        %200 = vperm.xlu0 %199, %v197
        %v201 = vpop.permute.xlu0 %200
        %vm203 = vcmask 97280
        %v205 = vsel %vm203, %v194, 0
        %vm207 = vcmask 1043456
        %v209 = vsel %vm207, %v196, 0
        %211 = vmatprep.subr.mxu0 0.0
        %212 = vmatpush1.msra.mxu0 0.0
        %213 = vmatprep.subr.mxu0 0.0
        %214 = vmatpush1.msra.mxu0 0.0
        %215 = vmatprep.subr.mxu0 0.0
        %216 = vmatpush1.msra.mxu0 0.0
        %217 = vmatprep.subr.mxu0 0.0
        %218 = vmatpush1.msra.mxu0 0.0
        %219 = vmatprep.subr.mxu0 0.0
        %220 = vmatpush1.msra.mxu0 0.0
        %221 = vmatprep.subr.mxu0 0.0
        %222 = vmatpush1.msra.mxu0 0.0
        %223 = vmatprep.subr.mxu0 0.0
        %224 = vmatpush1.msra.mxu0 0.0
        %225 = vmatprep.subr.mxu0 0.0
        %226 = vmatpush1.msra.mxu0 0.0
        %227 = vmatprep.subr.mxu0 0.0
        %228 = vmatpush1.msra.mxu0 0.0
        %229 = vmatprep.subr.mxu0 0.0
        %230 = vmatpush1.msra.mxu0 0.0
        %231 = vmatprep.subr.mxu0 0.0
        %232 = vmatpush1.msra.mxu0 0.0
        %233 = vmatprep.subr.mxu0 0.0
        %234 = vmatpush1.msra.mxu0 0.0
        %235 = vmatprep.subr.mxu0 0.0
        %236 = vmatpush1.msra.mxu0 0.0
        %237 = vmatprep.subr.mxu0 0.0
        %238 = vmatpush1.msra.mxu0 0.0
        %239 = vmatprep.subr.mxu0 0.0
        %240 = vmatpush1.msra.mxu0 %v209
        %241 = vmatprep.subr.mxu0 0.0
        %242 = vmatpush1.msra.mxu0 %v195
        %243 = vmatprep.subr.mxu0 0.0
        %244 = vmatpush2.msra.mxu0 0.0
        %245 = vmatprep.subr.mxu0 0.0
        %246 = vmatpush2.msra.mxu0 0.0
        %247 = vmatprep.subr.mxu0 0.0
        %248 = vmatpush2.msra.mxu0 0.0
        %249 = vmatprep.subr.mxu0 0.0
        %250 = vmatpush2.msra.mxu0 0.0
        %251 = vmatprep.subr.mxu0 0.0
        %252 = vmatpush2.msra.mxu0 0.0
        %253 = vmatprep.subr.mxu0 0.0
        %254 = vmatpush2.msra.mxu0 0.0
        %255 = vmatprep.subr.mxu0 0.0
        %256 = vmatpush2.msra.mxu0 0.0
        %257 = vmatprep.subr.mxu0 0.0
        %258 = vmatpush2.msra.mxu0 0.0
        %259 = vmatprep.subr.mxu0 0.0
        %260 = vmatpush2.msra.mxu0 0.0
        %261 = vmatprep.subr.mxu0 0.0
        %262 = vmatpush2.msra.mxu0 0.0
        %263 = vmatprep.subr.mxu0 0.0
        %264 = vmatpush2.msra.mxu0 0.0
        %265 = vmatprep.subr.mxu0 0.0
        %266 = vmatpush2.msra.mxu0 0.0
        %267 = vmatprep.subr.mxu0 0.0
        %268 = vmatpush2.msra.mxu0 0.0
        %269 = vmatprep.subr.mxu0 0.0
        %270 = vmatpush2.msra.mxu0 0.0
        %271 = vmatprep.subr.mxu0 0.0
        %272 = vmatpush2.msra.mxu0 0.0
        %273 = vmatprep.subr.mxu0 0.0
        %274 = vmatpush2.msra.mxu0 0.0
        %275 = vmatprep.mubr.f32.mxu0 0.0
        %276 = vmatmul.mubr.f32.gmra.mxu0 %v205
        %v277 = vpop.f32.mrf.mxu0
        %v278 = vadd.f32 %v201, %v277
        %v279 = vpop.f32.mrf.mxu0
        %280 = vdwg.mxu0
        %281 = vst [vmem:[%s185] sm:$0xff] %v278
        %s282 = sand.u32 %s109, 1
        %s283 = scalar_lea.sflag [#allocation3], %s282
        %s284 = sand.u32 %s109, 1
        %s285 = smul.addr %s284, 8
        %s286 = scalar_lea.vmem [#allocation2], %s285
        // Predicated region
        $region33: #{depthwise_conv1d.1} parent=31 // pred_check
          %p287 = pneg %p119
        $region34: #{depthwise_conv1d.1} parent=31 // pred_check_branch
          %289 = sbr.rel (%p287) target = $region36
        $region35: #{depthwise_conv1d.1} parent=31 // pred_region
          %s291 = ssub.s32 128, 128
          %292 = vsyncadd %s283, %s291
          %s293 = sadd.s32 %s22, %s21
          %s294 = smul.addr %s293, 128
          %s295 = scalar_lea.hbm %s3, %s294
          %s297 = sshll.u32 %s286, 4
          %s298 = int_to_ptr.vmem [resolvable:$true] %s297
          %300 = dma.vmem_to_hbm [thread:$0]  %s298, 128, %s295, %s283
        $region36: #{depthwise_conv1d.1} parent=31 // pred_fallthru
          _
      $region32: #{depthwise_conv1d.1} parent=5 // pred_fallthru
        _
      %p301 = scmp.le.s32.totalorder 2, %s12
      // Predicated region
      $region37: #{depthwise_conv1d.1} parent=5 // pred_check
        %p302 = pneg %p301
      $region38: #{depthwise_conv1d.1} parent=5 // pred_check_branch
        %304 = sbr.rel (%p302) target = $region40
      $region39: #{depthwise_conv1d.1} parent=5 // pred_region
        %s305 = ssub.s32 %s12, 2
        // Predicated region
        $region41: #{depthwise_conv1d.1} parent=39 // pred_check
          %p306 = pneg %p125
        $region42: #{depthwise_conv1d.1} parent=39 // pred_check_branch
          %308 = sbr.rel (%p306) target = $region44
        $region43: #{depthwise_conv1d.1} parent=39 // pred_region
          %s309 = sand.u32 %s110, 1
          %s310 = scalar_lea.sflag [#allocation3], %s309
          %s311 = sand.u32 %s110, 1
          %s312 = smul.addr %s311, 8
          %s313 = scalar_lea.vmem [#allocation2], %s312
          %314 = dma.done %s310, 128
        $region44: #{depthwise_conv1d.1} parent=39 // pred_fallthru
          _
      $region40: #{depthwise_conv1d.1} parent=5 // pred_fallthru
        _
    $region6: #{depthwise_conv1d.1} parent=1 // loop_footer
      %s16 = sadd.s32 1, %s12
    $region7: #{depthwise_conv1d.1} parent=1 // loop_footer_branch
      %11 = sbr.rel target = $region3
    $region8: #{depthwise_conv1d.1} parent=1 // loop_exit
      _
    %315 = vsyncpa [#allocation3], 1
    %s316 = scalar_lea.sflag [#allocation3], 1
    %317 = vsyncpa %s316, 1

</llo_original>
